<compile_context>
chip_gen: v7x
topology: tpu7x:2x2x1
jax: 0.10.0
libtpu: 0.0.40
codegen_flags: <defaults>
</compile_context>

<pallas_src>
import functools

import jax
import jax.numpy as jnp
from jax.experimental import pallas as pl
from jax.experimental.pallas import tpu as pltpu

_SUBLANE = 8
_LANE = 128
_TARGET_TILE_BYTES = 2 * 1024 * 1024  # ~2 MiB per streamed tile (safe on v5e/v6e/v7x)


def _round_up(x, m):
    return (x + m - 1) // m * m


def _round_down(x, m):
    return (x // m) * m


def _tile_sizes(n_rows, n_lanes, itemsize):
    """Pick (row_tile, lane_tile) targeting ~_TARGET_TILE_BYTES per grid step."""
    packing = max(1, 4 // itemsize)          # sublane packing: 1 f32, 2 bf16, 4 i8/fp8
    row_granule = _SUBLANE * packing
    # Lane tile: lane-dense multiple of 128, capped so even a minimal-row tile
    # stays within the target payload for very wide images.
    max_lane = max(_LANE,
                   _round_down(_TARGET_TILE_BYTES // (row_granule * itemsize), _LANE))
    lane_tile = min(_round_up(n_lanes, _LANE), max_lane)
    # Row tile: grow so each step moves ~2 MiB even when H*W is small.
    row_tile = _TARGET_TILE_BYTES // (lane_tile * itemsize)
    row_tile = max(row_granule, _round_down(row_tile, row_granule))
    row_tile = min(row_tile, _round_up(n_rows, row_granule))
    return row_tile, lane_tile


def _normalize_kernel(x_ref, mean_ref, inv_std_ref, o_ref, *, row_tile):
    # x_ref:       (row_tile, lane_tile)  streamed image tile
    # mean_ref:    (r_pad, 1) f32         resident per-row means (all rows)
    # inv_std_ref: (r_pad, 1) f32         resident per-row 1/std   (all rows)
    r0 = pl.multiple_of(pl.program_id(0) * row_tile, row_tile)
    mean = mean_ref[pl.ds(r0, row_tile), :]
    inv_std = inv_std_ref[pl.ds(r0, row_tile), :]
    x = x_ref[...].astype(jnp.float32)
    o_ref[...] = ((x - mean) * inv_std).astype(o_ref.dtype)


def normalization_forward(img, mean, std, *, donate_input=False):
    """img: (N, C, H, W); mean/std: (C,). Returns (img - mean[:,None,None]) / std[:,None,None]."""
    N, C, H, W = img.shape
    HW = H * W
    R = N * C
    dtype = img.dtype
    itemsize = jnp.dtype(dtype).itemsize

    row_tile, lane_tile = _tile_sizes(R, HW, itemsize)
    grid = (pl.cdiv(R, row_tile), pl.cdiv(HW, lane_tile))
    r_pad = grid[0] * row_tile  # row extent covered by the grid

    # Lane-dense 2D slab (free metadata reshape for contiguous NCHW).
    x2d = img.reshape(R, HW)

    # Per-row constants in f32; pad only this tiny column to the grid's row
    # extent so the in-kernel dynamic slice of the resident buffer is always
    # in bounds (1/std multiply instead of divide; pad rows use 1.0).
    mean_rows = jnp.tile(mean.astype(jnp.float32), N)
    inv_std_rows = jnp.tile(1.0 / std.astype(jnp.float32), N)
    if r_pad != R:
        mean_rows = jnp.pad(mean_rows, (0, r_pad - R))
        inv_std_rows = jnp.pad(inv_std_rows, (0, r_pad - R), constant_values=1.0)
    mean_rows = mean_rows.reshape(r_pad, 1)
    inv_std_rows = inv_std_rows.reshape(r_pad, 1)

    # Explicit VMEM budget: 2x double-buffered (in + out) tiles + resident
    # constants + headroom, clamped to limits that are safe on v5e/v6e/v7x.
    tile_bytes = row_tile * lane_tile * itemsize
    const_bytes = 2 * r_pad * _LANE * 4  # (r_pad,1) f32, lane-padded in VMEM
    vmem_limit = int(min(48 * 1024 * 1024,
                         max(16 * 1024 * 1024,
                             4 * tile_bytes + 2 * const_bytes + (2 << 20))))

    out2d = pl.pallas_call(
        functools.partial(_normalize_kernel, row_tile=row_tile),
        out_shape=jax.ShapeDtypeStruct((R, HW), dtype),
        grid_spec=pltpu.PrefetchScalarGridSpec(
            num_scalar_prefetch=0,
            grid=grid,
            in_specs=[
                # Streaming image tiles: lane-dense, ~2 MiB each. Partial edge
                # blocks are handled by Pallas (no host-side padding needed).
                pl.BlockSpec((row_tile, lane_tile), lambda r, s: (r, s)),
                # Resident per-row constants: whole column, DMA'd once.
                pl.BlockSpec((r_pad, 1), lambda r, s: (0, 0)),
                pl.BlockSpec((r_pad, 1), lambda r, s: (0, 0)),
            ],
            out_specs=pl.BlockSpec((row_tile, lane_tile), lambda r, s: (r, s)),
        ),
        compiler_params=pltpu.CompilerParams(
            # Fully element-independent op -> both axes parallel (megacore / 2-TC).
            dimension_semantics=("parallel", "parallel"),
            vmem_limit_bytes=vmem_limit,
        ),
        # Callers that donate the image can reuse its HBM buffer for the output.
        input_output_aliases=({0: 0} if donate_input else {}),
    )(x2d, mean_rows, inv_std_rows)

    return out2d.reshape(N, C, H, W)


if __name__ == "__main__":
    key = jax.random.PRNGKey(0)
    k_img, k_img2 = jax.random.split(key, 2)

    # Main demo shapes.
    N, C, H, W = 2, 4, 16, 16
    img = jax.random.normal(k_img, (N, C, H, W), dtype=jnp.float32)
    mean = jnp.array([0.485, 0.456, 0.406, 0.5], dtype=jnp.float32)[:C]
    std = jnp.array([0.229, 0.224, 0.225, 0.25], dtype=jnp.float32)[:C]

    out = jax.block_until_ready(normalization_forward(img, mean, std))
    ref = (img - mean.reshape(1, C, 1, 1)) / std.reshape(1, C, 1, 1)
    assert out.shape == (N, C, H, W)
    assert jnp.allclose(out, ref, atol=1e-5, rtol=1e-5)

    # Odd shapes: exercises the no-pad partial-block path (R % 8 != 0, HW % 128 != 0).
    N2, C2, H2, W2 = 2, 3, 9, 13
    img2 = jax.random.normal(k_img2, (N2, C2, H2, W2), dtype=jnp.float32)
    mean2 = mean[:C2]
    std2 = std[:C2]
    out2 = jax.block_until_ready(normalization_forward(img2, mean2, std2))
    ref2 = (img2 - mean2.reshape(1, C2, 1, 1)) / std2.reshape(1, C2, 1, 1)
    assert out2.shape == (N2, C2, H2, W2)
    assert jnp.allclose(out2, ref2, atol=1e-5, rtol=1e-5)

    print("KERNEL_OK")
</pallas_src>

<mosaic_0001>
module attributes {stable_mosaic.version = 11 : i64} {
  func.func @_normalize_kernel(%arg0: i32, %arg1: i32, %arg2: memref<8x256xf32, #tpu.memory_space<vmem>>, %arg3: memref<8x1xf32, #tpu.memory_space<vmem>>, %arg4: memref<8x1xf32, #tpu.memory_space<vmem>>, %arg5: memref<8x256xf32, #tpu.memory_space<vmem>>) attributes {dimension_semantics = [#tpu.dimension_semantics<parallel>, #tpu.dimension_semantics<parallel>], iteration_bounds = array<i64: 1, 1>, scalar_prefetch = 0 : i64, scratch_operands = 0 : i64, tpu.core_type = #tpu.core_type<tc>, window_params = [{transform_indices = @transform_0, window_bounds = array<i64: 8, 256>}, {pipeline_mode = #tpu.pipeline_mode<synchronous>, transform_indices = @transform_1, window_bounds = array<i64: 8, 1>}, {pipeline_mode = #tpu.pipeline_mode<synchronous>, transform_indices = @transform_2, window_bounds = array<i64: 8, 1>}, {transform_indices = @transform_3, window_bounds = array<i64: 8, 256>}]} {
    %c8_i32 = arith.constant 8 : i32
    %0 = arith.muli %arg0, %c8_i32 : i32
    %1 = tpu.assume_multiple %0, 8 : i32
    %2 = arith.index_cast %1 : i32 to index
    %c0 = arith.constant 0 : index
    %3 = vector.load %arg3[%2, %c0] : memref<8x1xf32, #tpu.memory_space<vmem>>, vector<8x1xf32>
    %4 = arith.index_cast %1 : i32 to index
    %c0_0 = arith.constant 0 : index
    %5 = vector.load %arg4[%4, %c0_0] : memref<8x1xf32, #tpu.memory_space<vmem>>, vector<8x1xf32>
    %c0_1 = arith.constant 0 : index
    %c0_2 = arith.constant 0 : index
    %6 = vector.load %arg2[%c0_1, %c0_2] : memref<8x256xf32, #tpu.memory_space<vmem>>, vector<8x256xf32>
    %7 = vector.broadcast %3 : vector<8x1xf32> to vector<8x256xf32>
    %8 = arith.subf %6, %7 : vector<8x256xf32>
    %9 = vector.broadcast %5 : vector<8x1xf32> to vector<8x256xf32>
    %10 = arith.mulf %8, %9 : vector<8x256xf32>
    %c0_3 = arith.constant 0 : index
    %c0_4 = arith.constant 0 : index
    %11 = vector.load %arg5[%c0_3, %c0_4] : memref<8x256xf32, #tpu.memory_space<vmem>>, vector<8x256xf32>
    tpu.vector_store %arg5[%c0_3, %c0_4], %10 {strides = array<i32>} : memref<8x256xf32, #tpu.memory_space<vmem>>, vector<8x256xf32>,
    return
  }
  func.func @transform_0(%arg0: i32, %arg1: i32) -> (i32, i32) {
    %c0_i32 = arith.constant 0 : i32
    return %arg0, %arg1 : i32, i32
  }
  func.func @transform_1(%arg0: i32, %arg1: i32) -> (i32, i32) {
    %c0_i32 = arith.constant 0 : i32
    %c0_i32_0 = arith.constant 0 : i32
    %c0_i32_1 = arith.constant 0 : i32
    return %c0_i32, %c0_i32_0 : i32, i32
  }
  func.func @transform_2(%arg0: i32, %arg1: i32) -> (i32, i32) {
    %c0_i32 = arith.constant 0 : i32
    %c0_i32_0 = arith.constant 0 : i32
    %c0_i32_1 = arith.constant 0 : i32
    return %c0_i32, %c0_i32_0 : i32, i32
  }
  func.func @transform_3(%arg0: i32, %arg1: i32) -> (i32, i32) {
    %c0_i32 = arith.constant 0 : i32
    return %arg0, %arg1 : i32, i32
  }
}

</mosaic_0001>

<llo_original>
// kernel: tpu_custom_call.1
$region0: #{tpu_custom_call.1}
  #allocation0 [shape = 'u32[]', space=smem, size = 0x4, offset = 0x4, fixed_abs, tag = 'smem constant byte address 0x4 - core index']
  #allocation1 [shape = 'u32[144,128]{1,0:T(1,128)}', space=vmem, size = 0x12000, scoped, tag = 'internal scratch']
  %s0 = inlined_call_operand.vmem [shape: f32[8,256], index: 0, kind: input, shape index: {}]
  %s1 = inlined_call_operand.vmem [shape: f32[8,1], index: 1, kind: input, shape index: {}]
  %s2 = inlined_call_operand.vmem [shape: f32[8,1], index: 2, kind: input, shape index: {}]
  %s3 = inlined_call_operand.hbm [shape: f32[8,256], index: 3, kind: output, shape index: {}]
  %s4 = sld [smem:[#allocation0]]
  $region22: #{tpu_custom_call.1} parent=0
    _
  %s6 = ssub.s32 1, %s4
  %s7 = scalar_select 0, %s6, %s4
  $region1: #{tpu_custom_call.1} parent=0
    #allocation2 [shape = 'u8[8192]{0}', space=vmem, size = 0x2000, scoped, tag = 'output window, operand 0, single buffered']
    #allocation3 [shape = 's32[1]{0}', space=sflag, size = 0x4, scoped, tag = 'scoped memory for tpu_custom_call.1']
    %8 = vsyncpa [#allocation3], 0
    // Predicated region
    $region2: #{tpu_custom_call.1} parent=1 // pred_check
      _
    $region3: #{tpu_custom_call.1} parent=1 // pred_check_branch
      %10 = sbr.rel (0) target = $region5
    $region4: #{tpu_custom_call.1} parent=1 // pred_region
      _
    $region5: #{tpu_custom_call.1} parent=1 // pred_fallthru
      _
    // Predicated region
    $region6: #{tpu_custom_call.1} parent=1 // pred_check
      _
    $region7: #{tpu_custom_call.1} parent=1 // pred_check_branch
      %12 = sbr.rel (0) target = $region9
    $region8: #{tpu_custom_call.1} parent=1 // pred_region
      _
    $region9: #{tpu_custom_call.1} parent=1 // pred_fallthru
      _
    // Predicated region
    $region10: #{tpu_custom_call.1} parent=1 // pred_check
      _
    $region11: #{tpu_custom_call.1} parent=1 // pred_check_branch
      %14 = sbr.rel (0) target = $region13
    $region12: #{tpu_custom_call.1} parent=1 // pred_region
      _
    $region13: #{tpu_custom_call.1} parent=1 // pred_fallthru
      _
    %s15 = smul.u32 0, 8
    %s16 = scalar_lea.vmem %s1, %s15
    %v17 = vld [vmem:[%s16] sm:$0xff]
    %s18 = scalar_lea.vmem %s2, %s15
    %v19 = vld [vmem:[%s18] sm:$0xff]
    %v20 = vld [vmem:[%s0] sm:$0xff]
    %v21 = vld [vmem:[%s0 + $0x8] sm:$0xff]
    %23 = vset.pattern.permute.xlu0 0
    %24 = vperm.xlu0 %23, %v17
    %v25 = vpop.permute.xlu0 %24
    %v27 = vsub.f32 %v20, %v25
    %v28 = vsub.f32 %v21, %v25
    %30 = vset.pattern.permute.xlu0 0
    %31 = vperm.xlu0 %30, %v19
    %v32 = vpop.permute.xlu0 %31
    %v34 = vmul.f32 %v27, %v32
    %v35 = vmul.f32 %v28, %v32
    %36 = vst [vmem:[#allocation2] sm:$0xff] %v34
    %37 = vst [vmem:[#allocation2 + $0x8] sm:$0xff] %v35
    // Predicated region
    $region14: #{tpu_custom_call.1} parent=1 // pred_check
      _
    $region15: #{tpu_custom_call.1} parent=1 // pred_check_branch
      %39 = sbr.rel (0) target = $region17
    $region16: #{tpu_custom_call.1} parent=1 // pred_region
      %s41 = ssub.s32 256, 256
      %42 = vsyncadd [#allocation3], %s41
      %s44 = sshll.u32 [#allocation2], 4
      %s45 = int_to_ptr.vmem [resolvable:$true] %s44
      %47 = dma.vmem_to_hbm [thread:$0]  %s45, 256, %s3, [#allocation3]
    $region17: #{tpu_custom_call.1} parent=1 // pred_fallthru
      _
    // Predicated region
    $region18: #{tpu_custom_call.1} parent=1 // pred_check
      _
    $region19: #{tpu_custom_call.1} parent=1 // pred_check_branch
      %49 = sbr.rel (0) target = $region21
    $region20: #{tpu_custom_call.1} parent=1 // pred_region
      %50 = dma.done [#allocation3], 256
    $region21: #{tpu_custom_call.1} parent=1 // pred_fallthru
      _
    %51 = vsyncpa [#allocation3], 1

</llo_original>
